<compile_context>
chip_gen: v5e
topology: v5e:2x2
jax: 0.10.0
libtpu: 0.0.40
codegen_flags: <defaults>
</compile_context>

<pallas_src>
import functools

import jax
import jax.numpy as jnp
from jax import lax
from jax.experimental import pallas as pl
from jax.experimental.pallas import tpu as pltpu


_LANE = 128
_MAX_TILE_E = 8192            # review target for small/medium F
_TILE_VMEM_BUDGET = 16 << 20  # per-step working-set budget used to size TILE_E


# ---------------------------------------------------------------------------
# encode: StandardScaler over node ages (plain jnp; XLA fuses this trivially).
# ---------------------------------------------------------------------------
def encode_age(age):
    age = age.astype(jnp.float32)
    mean = jnp.mean(age)
    var = jnp.mean((age - mean) ** 2)        # population variance (sklearn)
    std = jnp.sqrt(var)
    std = jnp.where(std == 0.0, 1.0, std)    # sklearn _handle_zeros_in_scale
    return (age - mean) / std


# ---------------------------------------------------------------------------
# Feature-similarity helpers (feature axis is axis 0, edges on lanes).
# ---------------------------------------------------------------------------
def _l2_normalize(x, eps_sq=1e-24):
    # F.normalize(p=2, eps=1e-12): x / max(||x||, 1e-12) == x * rsqrt(max(ss,1e-24))
    ss = jnp.sum(x * x, axis=0, keepdims=True)
    return x * lax.rsqrt(jnp.maximum(ss, eps_sq))


def _softmax_f(x):
    e = jnp.exp(x - jnp.max(x, axis=0, keepdims=True))
    return e / jnp.sum(e, axis=0, keepdims=True)


def _log_softmax_f(x):
    m = x - jnp.max(x, axis=0, keepdims=True)
    return m - jnp.log(jnp.sum(jnp.exp(m), axis=0, keepdims=True))


def _feat_similarity(fd, fs, experiment):
    """fd, fs: (F, TILE_E) float32.  Returns (1, TILE_E) float32."""
    nfeat = fd.shape[0]
    if experiment == 'cosine':
        # torch.nn.CosineSimilarity(dim=1, eps=1e-6):
        #   den = max(||d||, eps) * max(||s||, eps)
        #       = sqrt(max(ssd, eps^2) * max(sss, eps^2))
        num = jnp.sum(fd * fs, axis=0, keepdims=True)
        ssd = jnp.sum(fd * fd, axis=0, keepdims=True)
        sss = jnp.sum(fs * fs, axis=0, keepdims=True)
        inv_den = lax.rsqrt(jnp.maximum(ssd, 1e-12) * jnp.maximum(sss, 1e-12))
        return num * inv_den
    if experiment == 'softmax_kl':
        # mean(KL(log_softmax(fd) || softmax(fs)));  exp/log form avoids the
        # 0 * (-inf) = NaN that log(softmax underflow) produces.
        log_p = _log_softmax_f(fd)
        log_q = _log_softmax_f(fs)
        q = jnp.exp(log_q)
        kl = q * (log_q - log_p)
        return jnp.sum(kl, axis=0, keepdims=True) * (1.0 / nfeat)
    if experiment == 'symmetric_mse_loss':
        d = fd - fs
        return jnp.sum(d * d, axis=0, keepdims=True) * (1.0 / nfeat)
    if experiment == 'proj':
        a = _l2_normalize(fd)
        b = _l2_normalize(fs)
        return 2.0 - (2.0 / nfeat) * jnp.sum(a * b, axis=0, keepdims=True)
    if experiment == 'softmax_mse':
        a = _softmax_f(fd)
        b = _softmax_f(fs)
        d = a - b
        return jnp.sum(d * d, axis=0, keepdims=True) * (1.0 / nfeat)
    if experiment == 'sqrtcos':
        a = _l2_normalize(fd)
        b = _l2_normalize(fs)
        num = jnp.sum(jnp.sqrt(jnp.abs(a * b)), axis=0, keepdims=True)
        den = (jnp.sum(a, axis=0, keepdims=True) *
               jnp.sum(b, axis=0, keepdims=True))
        return num / den   # den may be ~0 / negative -> mirrors torch reference
    if experiment == 'ISC':
        num = jnp.sum(jnp.sqrt(jnp.abs(fd * fs)), axis=0, keepdims=True)
        den = (jnp.sqrt(jnp.abs(jnp.sum(fd, axis=0, keepdims=True))) *
               jnp.sqrt(jnp.abs(jnp.sum(fs, axis=0, keepdims=True))))
        return num / den   # den may be 0 -> mirrors torch reference
    raise NotImplementedError(experiment)


# ---------------------------------------------------------------------------
# calc_dist kernel: raw per-edge similarity (tiled over edges, fully parallel)
# ---------------------------------------------------------------------------
def _make_sim_kernel(experiment):
    def kernel(fd_ref, fs_ref, demo_ref, sim_ref):
        fd = fd_ref[...].astype(jnp.float32)        # (F, TILE_E)
        fs = fs_ref[...].astype(jnp.float32)        # (F, TILE_E)
        # demo = age_sim + sex_sim, precomputed in the wrapper's gather pass.
        sim_ref[...] = demo_ref[...] * _feat_similarity(fd, fs, experiment)
    return kernel


def _choose_tile_e(num_edges, feat_dim):
    """Largest lane-tile that fits the per-step VMEM budget, >= 2 tiles."""
    # Per edge-lane footprint: 2 bf16 (F,) feature columns x 2 pipeline
    # buffers, ~6 f32 (F,) temporaries (softmax/normalize paths), plus the
    # small demo/output rows (double-buffered f32).
    per_lane = feat_dim * (2 * 2 * 2 + 6 * 4) + 4 * 4 * 2
    cap = max(_LANE, (_TILE_VMEM_BUDGET // per_lane) // _LANE * _LANE)
    tile = min(_MAX_TILE_E, cap)
    if num_edges > _LANE:
        # keep >= 2 tiles so the "parallel" edge grid balances across v7x's
        # two TensorCores (irrelevant on single-TC v5e/v6e, but harmless).
        half = -(-num_edges // 2)
        half = -(-half // _LANE) * _LANE
        tile = min(tile, half)
    return int(max(_LANE, tile))


def _calc_sim_raw(fd_t, fs_t, demo, experiment, tile_e):
    """fd_t/fs_t: (F, E_pad) bf16, demo: (1, E_pad) f32, E_pad % tile_e == 0."""
    F_, E_pad = fd_t.shape
    assert E_pad % tile_e == 0 and tile_e % _LANE == 0
    num_tiles = E_pad // tile_e

    feat_spec = pl.BlockSpec((F_, tile_e), lambda i: (0, i))
    row_spec = pl.BlockSpec((1, tile_e), lambda i: (0, i))

    # Explicit scoped-VMEM limit: sized from the actual per-tile footprint so
    # large tiles stay double-buffered on v5e (16 MiB default) without
    # exceeding v7x's 64 MiB physical VMEM.
    est = 8 * F_ * tile_e + 24 * F_ * tile_e + 16 * tile_e
    vmem_limit = int(min(max(2 * est, 16 << 20), 40 << 20))

    return pl.pallas_call(
        _make_sim_kernel(experiment),
        grid=(num_tiles,),
        in_specs=[feat_spec, feat_spec, row_spec],
        out_specs=row_spec,
        out_shape=jax.ShapeDtypeStruct((1, E_pad), jnp.float32),
        compiler_params=pltpu.CompilerParams(
            dimension_semantics=("parallel",),
            vmem_limit_bytes=vmem_limit),
    )(fd_t, fs_t, demo)


# ---------------------------------------------------------------------------
# Wrapper mirroring Preprocessing.forward / apply_edge_processing / calc_dist
# ---------------------------------------------------------------------------
@functools.partial(jax.jit, static_argnames=('tresh', 'experiment', 'sim_type',
                                             'feat_dtype'))
def preprocessing_forward(feat, age, sex, src_idx, dst_idx, *,
                          tresh, experiment, sim_type,
                          feat_dtype=jnp.bfloat16):
    """
    feat: (N, F) float32, age: (N, 1) float32, sex: (N, 1) int32,
    src_idx / dst_idx: (E,) int32 edge endpoints.
    Returns: standardized ages (N, 1), per-edge similarity (E, 1),
             drop mask (E, 1) bool.
    """
    E = src_idx.shape[0]
    Fdim = feat.shape[1]

    # encode(g): StandardScaler over node ages (stored back as g.ndata['age'])
    age_encoded = encode_age(age)

    # --- gather node data onto edges in an edges-on-lanes layout -----------
    # TODO(synk): moving this gather in-kernel (VMEM-resident (F, N) feature
    # table + per-tile index slab) would cut feature HBM traffic further when
    # E >> N, but lane-axis dynamic gather has no clean Mosaic lowering yet.
    feat_t = jnp.transpose(feat.astype(feat_dtype))          # (F, N) bf16
    fd_t = jnp.take(feat_t, dst_idx, axis=1)                 # (F, E)
    fs_t = jnp.take(feat_t, src_idx, axis=1)                 # (F, E)

    # age_sim = (|age_dst - age_src| <= 5); sex_sim = not xor(dst, src).
    # Folded into the same XLA gather pass -> single (1, E) f32 row.
    age_d = age[dst_idx, 0].astype(jnp.float32)              # raw 'Age'
    age_s = age[src_idx, 0].astype(jnp.float32)
    sex_d = sex[dst_idx, 0]
    sex_s = sex[src_idx, 0]
    age_sim = (jnp.abs(age_d - age_s) <= 5.0).astype(jnp.float32)
    sex_sim = (sex_d == sex_s).astype(jnp.float32)
    demo = (age_sim + sex_sim).reshape(1, E)

    # pad edge axis to whole lane-tiles (full blocks only; padding sliced off)
    tile_e = _choose_tile_e(E, Fdim)
    E_pad = -(-E // tile_e) * tile_e
    if E_pad != E:
        pad = E_pad - E
        fd_t = jnp.pad(fd_t, ((0, 0), (0, pad)))
        fs_t = jnp.pad(fs_t, ((0, 0), (0, pad)))
        demo = jnp.pad(demo, ((0, 0), (0, pad)))

    sim_raw = _calc_sim_raw(fd_t, fs_t, demo, experiment, tile_e)[0, :E]

    # --- normalization + thresholding (tiny (E,) arrays -> plain jnp) ------
    if sim_type in ('supp_abs_from', 'sup_abs_to'):
        sim = jnp.abs(sim_raw)
        if sim_type == 'supp_abs_from':
            mask = sim >= tresh
        else:                              # 'sup_abs_to'
            mask = sim <= tresh
    else:
        smin = jnp.min(sim_raw)
        smax = jnp.max(sim_raw)
        rng = smax - smin
        # Guard: if all sims are equal the torch reference divides by 0 (NaN);
        # we substitute 1.0 to stay finite.
        sim = (sim_raw - smin) / jnp.where(rng == 0.0, 1.0, rng)
        if sim_type == 'supp_from':
            mask = sim >= tresh
        elif sim_type == 'supp_to':
            mask = sim <= tresh
        else:
            mask = jnp.isnan(sim)          # torch: mask = sim != sim
    sim = sim.reshape(E, 1)
    mask = mask.reshape(E, 1)

    # TODO(synk): dgl.remove_edges(g, mask) is a dynamic-shape graph mutation
    # with no Pallas equivalent; we return the mask of edges to drop instead.
    return age_encoded, sim, mask


# Deterministic init of the (unused in this path) nn.Linear(4, 1) from
# __init__, kept for shape fidelity with similarity='Linear'.
def init_linear_params():
    w = jnp.arange(4, dtype=jnp.float32).reshape(1, 4) * 0.1 - 0.15   # (1, 4)
    b = jnp.zeros((1,), dtype=jnp.float32)
    return w, b


if __name__ == "__main__":
    key = jax.random.PRNGKey(0)
    k1, k2, k3, k4, k5 = jax.random.split(key, 5)

    N, F, E = 64, 32, 1024   # nodes, feature dim, edges

    feat = jax.random.normal(k1, (N, F), dtype=jnp.float32)
    age = jax.random.uniform(k2, (N, 1), minval=20.0, maxval=90.0,
                             dtype=jnp.float32)
    sex = jax.random.bernoulli(k3, 0.5, (N, 1)).astype(jnp.int32)
    src_idx = jax.random.randint(k4, (E,), 0, N, dtype=jnp.int32)
    dst_idx = jax.random.randint(k5, (E,), 0, N, dtype=jnp.int32)

    _ = init_linear_params()  # nn.Linear(4, 1) params (unused by this config)

    # global min/max normalization path
    age_enc, sim1, mask1 = preprocessing_forward(
        feat, age, sex, src_idx, dst_idx,
        tresh=0.5, experiment='cosine', sim_type='supp_from')

    # abs-threshold path (no global stats)
    _, sim2, mask2 = preprocessing_forward(
        feat, age, sex, src_idx, dst_idx,
        tresh=0.1, experiment='softmax_kl', sim_type='supp_abs_from')

    jax.block_until_ready((age_enc, sim1, mask1, sim2, mask2))
    assert age_enc.shape == (N, 1)
    assert sim1.shape == (E, 1) and mask1.shape == (E, 1)
    assert sim2.shape == (E, 1) and mask2.shape == (E, 1)
    assert mask1.dtype == jnp.bool_ and mask2.dtype == jnp.bool_
    assert bool(jnp.all(jnp.isfinite(sim1)))
    assert bool(jnp.all(jnp.isfinite(sim2)))
    print("KERNEL_OK")
</pallas_src>

<mosaic_0001>
module attributes {stable_mosaic.version = 11 : i64} {
  func.func @kernel(%arg0: i32, %arg1: memref<32x512xbf16, #tpu.memory_space<vmem>>, %arg2: memref<32x512xbf16, #tpu.memory_space<vmem>>, %arg3: memref<1x512xf32, #tpu.memory_space<vmem>>, %arg4: memref<1x512xf32, #tpu.memory_space<vmem>>) attributes {dimension_semantics = [#tpu.dimension_semantics<parallel>], iteration_bounds = array<i64: 2>, scalar_prefetch = 0 : i64, scratch_operands = 0 : i64, tpu.core_type = #tpu.core_type<tc>, window_params = [{transform_indices = @transform_0, window_bounds = array<i64: 32, 512>}, {transform_indices = @transform_1, window_bounds = array<i64: 32, 512>}, {transform_indices = @transform_2, window_bounds = array<i64: 1, 512>}, {transform_indices = @transform_3, window_bounds = array<i64: 1, 512>}]} {
    %c0 = arith.constant 0 : index
    %c0_0 = arith.constant 0 : index
    %0 = vector.load %arg1[%c0, %c0_0] : memref<32x512xbf16, #tpu.memory_space<vmem>>, vector<32x512xbf16>
    %1 = arith.extf %0 : vector<32x512xbf16> to vector<32x512xf32>
    %c0_1 = arith.constant 0 : index
    %c0_2 = arith.constant 0 : index
    %2 = vector.load %arg2[%c0_1, %c0_2] : memref<32x512xbf16, #tpu.memory_space<vmem>>, vector<32x512xbf16>
    %3 = arith.extf %2 : vector<32x512xbf16> to vector<32x512xf32>
    %c0_3 = arith.constant 0 : index
    %c0_4 = arith.constant 0 : index
    %4 = vector.load %arg3[%c0_3, %c0_4] : memref<1x512xf32, #tpu.memory_space<vmem>>, vector<1x512xf32>
    %5 = arith.mulf %1, %3 : vector<32x512xf32>
    %cst = arith.constant dense<0.000000e+00> : vector<512xf32>
    %6 = vector.multi_reduction <add>, %5, %cst [0] : vector<32x512xf32> to vector<512xf32>
    %7 = vector.shape_cast %6 : vector<512xf32> to vector<1x512xf32>
    %8 = arith.mulf %1, %1 : vector<32x512xf32>
    %cst_5 = arith.constant dense<0.000000e+00> : vector<512xf32>
    %9 = vector.multi_reduction <add>, %8, %cst_5 [0] : vector<32x512xf32> to vector<512xf32>
    %10 = vector.shape_cast %9 : vector<512xf32> to vector<1x512xf32>
    %11 = arith.mulf %3, %3 : vector<32x512xf32>
    %cst_6 = arith.constant dense<0.000000e+00> : vector<512xf32>
    %12 = vector.multi_reduction <add>, %11, %cst_6 [0] : vector<32x512xf32> to vector<512xf32>
    %13 = vector.shape_cast %12 : vector<512xf32> to vector<1x512xf32>
    %cst_7 = arith.constant 9.99999996E-13 : f32
    %14 = vector.broadcast %cst_7 : f32 to vector<1x512xf32>
    %15 = arith.maximumf %10, %14 : vector<1x512xf32>
    %cst_8 = arith.constant 9.99999996E-13 : f32
    %16 = vector.broadcast %cst_8 : f32 to vector<1x512xf32>
    %17 = arith.maximumf %13, %16 : vector<1x512xf32>
    %18 = arith.mulf %15, %17 : vector<1x512xf32>
    %19 = math.rsqrt %18 : vector<1x512xf32>
    %20 = arith.mulf %7, %19 : vector<1x512xf32>
    %21 = arith.mulf %4, %20 : vector<1x512xf32>
    %c0_9 = arith.constant 0 : index
    %c0_10 = arith.constant 0 : index
    %22 = vector.load %arg4[%c0_9, %c0_10] : memref<1x512xf32, #tpu.memory_space<vmem>>, vector<1x512xf32>
    tpu.vector_store %arg4[%c0_9, %c0_10], %21 {strides = array<i32>} : memref<1x512xf32, #tpu.memory_space<vmem>>, vector<1x512xf32>,
    return
  }
  func.func @transform_0(%arg0: i32) -> (i32, i32) {
    %c0_i32 = arith.constant 0 : i32
    %c0_i32_0 = arith.constant 0 : i32
    return %c0_i32, %arg0 : i32, i32
  }
  func.func @transform_1(%arg0: i32) -> (i32, i32) {
    %c0_i32 = arith.constant 0 : i32
    %c0_i32_0 = arith.constant 0 : i32
    return %c0_i32, %arg0 : i32, i32
  }
  func.func @transform_2(%arg0: i32) -> (i32, i32) {
    %c0_i32 = arith.constant 0 : i32
    %c0_i32_0 = arith.constant 0 : i32
    return %c0_i32, %arg0 : i32, i32
  }
  func.func @transform_3(%arg0: i32) -> (i32, i32) {
    %c0_i32 = arith.constant 0 : i32
    %c0_i32_0 = arith.constant 0 : i32
    return %c0_i32, %arg0 : i32, i32
  }
}

</mosaic_0001>

<llo_original>
// kernel: preprocessing_forward.1
$region0: #{preprocessing_forward.1}
  #allocation0 [shape = 'u32[]', space=smem, size = 0x4, offset = 0x4, fixed_abs, tag = 'smem constant byte address 0x4 - core index']
  #allocation1 [shape = 'u32[72,128]{1,0:T(1,128)}', space=vmem, size = 0x9000, scoped, tag = 'internal scratch']
  %s0 = inlined_call_operand.vmem [shape: bf16[32,1024], index: 0, kind: input, shape index: {}]
  %s1 = inlined_call_operand.vmem [shape: bf16[32,1024], index: 1, kind: input, shape index: {}]
  %s2 = inlined_call_operand.vmem [shape: f32[1,1024], index: 2, kind: input, shape index: {}]
  %s3 = inlined_call_operand.vmem [shape: f32[1,1024], index: 3, kind: output, shape index: {}]
  %s4 = sld [smem:[#allocation0]]
  $region91: #{preprocessing_forward.1} parent=0
    _
  %s6 = ssub.s32 1, %s4
  %s7 = scalar_select 0, %s6, %s4
  $region1: #{preprocessing_forward.1} parent=0
    #allocation2 [shape = 'u8[65536]{0}', space=vmem, size = 0x10000, scoped, tag = 'input window, operand 0']
    #allocation3 [shape = 'u8[65536]{0}', space=vmem, size = 0x10000, scoped, tag = 'input window, operand 1']
    loop: start=0, step=1, limit=4
    $region2: #{preprocessing_forward.1} parent=1 // loop_pre_header
      _
    $region3: #{preprocessing_forward.1} parent=1 // loop_header
      %s9 = sphi 0, %s13
      %p10 = scmp.ge.s32.totalorder %s9, 4
      %s19 = sphi 0, %s21
      %s22 = sphi 0, %s19
      %s23 = sphi 0, %s22
      %s39 = sphi 0, %s23
      %s45 = sphi 0, %s47
      %s48 = sphi 0, %s45
      %s49 = sphi 0, %s48
      %s65 = sphi 0, %s49
      %s71 = sphi 0, %s73
      %s74 = sphi 0, %s71
      %s75 = sphi 0, %s74
      %s91 = sphi 0, %s75
      %s97 = sphi 0, %s99
      %s100 = sphi 0, %s97
      %s101 = sphi 0, %s100
      %s117 = sphi 0, %s101
    $region4: #{preprocessing_forward.1} parent=1 // loop_header_branch
      %12 = sbr.rel (%p10) target = $region8
    $region5: #{preprocessing_forward.1} parent=1 // loop_body
      %s14 = ssub.s32 %s9, 1
      %s15 = ssub.s32 %s9, 2
      %s16 = sadd.s32 %s9, 1
      %s17 = ssub.s32 %s9, %s16
      %p18 = scmp.eq.s32.totalorder %s17, 0
      %s20 = sadd.s32 %s19, 1
      %s21 = scalar_select %p18, %s19, %s20
      %p24 = pneg %p18
      %p25 = scmp.eq.s32.totalorder %s9, 1
      %p26 = por %p24, %p25
      %p27 = scmp.ne.s32.totalorder %s19, %s22
      %p28 = scmp.eq.s32.totalorder %s9, 0
      %p29 = por %p27, %p28
      %p30 = scmp.ne.s32.totalorder %s19, %s22
      %p31 = scmp.eq.s32.totalorder %s14, 1
      %p32 = por %p30, %p31
      %p33 = scmp.ne.s32.totalorder %s22, %s23
      %p34 = scmp.eq.s32.totalorder %s14, 0
      %p35 = por %p33, %p34
      %p36 = scmp.ne.s32.totalorder %s22, %s23
      %p37 = scmp.eq.s32.totalorder %s15, 1
      %p38 = por %p36, %p37
      %p40 = scmp.ne.s32.totalorder %s23, %s39
      %p41 = scmp.eq.s32.totalorder %s15, 0
      %p42 = por %p40, %p41
      %s43 = ssub.s32 %s9, %s16
      %p44 = scmp.eq.s32.totalorder %s43, 0
      %s46 = sadd.s32 %s45, 1
      %s47 = scalar_select %p44, %s45, %s46
      %p50 = pneg %p44
      %p51 = scmp.eq.s32.totalorder %s9, 1
      %p52 = por %p50, %p51
      %p53 = scmp.ne.s32.totalorder %s45, %s48
      %p54 = scmp.eq.s32.totalorder %s9, 0
      %p55 = por %p53, %p54
      %p56 = scmp.ne.s32.totalorder %s45, %s48
      %p57 = scmp.eq.s32.totalorder %s14, 1
      %p58 = por %p56, %p57
      %p59 = scmp.ne.s32.totalorder %s48, %s49
      %p60 = scmp.eq.s32.totalorder %s14, 0
      %p61 = por %p59, %p60
      %p62 = scmp.ne.s32.totalorder %s48, %s49
      %p63 = scmp.eq.s32.totalorder %s15, 1
      %p64 = por %p62, %p63
      %p66 = scmp.ne.s32.totalorder %s49, %s65
      %p67 = scmp.eq.s32.totalorder %s15, 0
      %p68 = por %p66, %p67
      %s69 = ssub.s32 %s9, %s16
      %p70 = scmp.eq.s32.totalorder %s69, 0
      %s72 = sadd.s32 %s71, 1
      %s73 = scalar_select %p70, %s71, %s72
      %p76 = pneg %p70
      %p77 = scmp.eq.s32.totalorder %s9, 1
      %p78 = por %p76, %p77
      %p79 = scmp.ne.s32.totalorder %s71, %s74
      %p80 = scmp.eq.s32.totalorder %s9, 0
      %p81 = por %p79, %p80
      %p82 = scmp.ne.s32.totalorder %s71, %s74
      %p83 = scmp.eq.s32.totalorder %s14, 1
      %p84 = por %p82, %p83
      %p85 = scmp.ne.s32.totalorder %s74, %s75
      %p86 = scmp.eq.s32.totalorder %s14, 0
      %p87 = por %p85, %p86
      %p88 = scmp.ne.s32.totalorder %s74, %s75
      %p89 = scmp.eq.s32.totalorder %s15, 1
      %p90 = por %p88, %p89
      %p92 = scmp.ne.s32.totalorder %s75, %s91
      %p93 = scmp.eq.s32.totalorder %s15, 0
      %p94 = por %p92, %p93
      %s95 = ssub.s32 %s9, %s16
      %p96 = scmp.eq.s32.totalorder %s95, 0
      %s98 = sadd.s32 %s97, 1
      %s99 = scalar_select %p96, %s97, %s98
      %p102 = pneg %p96
      %p103 = scmp.eq.s32.totalorder %s9, 1
      %p104 = por %p102, %p103
      %p105 = scmp.ne.s32.totalorder %s97, %s100
      %p106 = scmp.eq.s32.totalorder %s9, 0
      %p107 = por %p105, %p106
      %p108 = scmp.ne.s32.totalorder %s97, %s100
      %p109 = scmp.eq.s32.totalorder %s14, 1
      %p110 = por %p108, %p109
      %p111 = scmp.ne.s32.totalorder %s100, %s101
      %p112 = scmp.eq.s32.totalorder %s14, 0
      %p113 = por %p111, %p112
      %p114 = scmp.ne.s32.totalorder %s100, %s101
      %p115 = scmp.eq.s32.totalorder %s15, 1
      %p116 = por %p114, %p115
      %p118 = scmp.ne.s32.totalorder %s101, %s117
      %p119 = scmp.eq.s32.totalorder %s15, 0
      %p120 = por %p118, %p119
      %p121 = scmp.le.s32.totalorder 1, %s9
      %p122 = scmp.lt.s32.totalorder %s9, 3
      %p123 = pnand %p121, %p122
      %p124 = pneg %p123
      // Predicated region
      $region9: #{preprocessing_forward.1} parent=5 // pred_check
        _
      $region10: #{preprocessing_forward.1} parent=5 // pred_check_branch
        %126 = sbr.rel (%p123) target = $region12
      $region11: #{preprocessing_forward.1} parent=5 // pred_region
        %s127 = ssub.s32 %s9, 1
      $region12: #{preprocessing_forward.1} parent=5 // pred_fallthru
        _
      %p128 = scmp.lt.s32.totalorder %s9, 2
      // Predicated region
      $region13: #{preprocessing_forward.1} parent=5 // pred_check
        %p129 = pneg %p128
      $region14: #{preprocessing_forward.1} parent=5 // pred_check_branch
        %131 = sbr.rel (%p129) target = $region16
      $region15: #{preprocessing_forward.1} parent=5 // pred_region
        // Predicated region
        $region17: #{preprocessing_forward.1} parent=15 // pred_check
          %p132 = pneg %p29
        $region18: #{preprocessing_forward.1} parent=15 // pred_check_branch
          %134 = sbr.rel (%p132) target = $region20
        $region19: #{preprocessing_forward.1} parent=15 // pred_region
          %s135 = sand.u32 %s19, 1
          %s136 = sand.u32 %s19, 1
          %s137 = smul.addr %s136, 64
          %s138 = scalar_lea.vmem [#allocation2], %s137
          %s139 = smul.u32 4, %s9
          %s140 = smul.addr %s139, 4
          %s141 = scalar_lea.vmem %s0, %s140
          // Predicated region
          $region21: #{preprocessing_forward.1} parent=19 // pred_check
            _
          $region22: #{preprocessing_forward.1} parent=19 // pred_check_branch
            %143 = sbr.rel (0) target = $region24
          $region23: #{preprocessing_forward.1} parent=19 // pred_region
            // Predicated region
            $region25: #{preprocessing_forward.1} parent=23 // pred_check
              _
            $region26: #{preprocessing_forward.1} parent=23 // pred_check_branch
              %145 = sbr.rel (0) target = $region28
            $region27: #{preprocessing_forward.1} parent=23 // pred_region
              loop: start=0, step=1, limit=1
              $region29: #{preprocessing_forward.1} parent=27 // loop_pre_header
                _
              $region30: #{preprocessing_forward.1} parent=27 // loop_header
                %s147 = sphi 0, %s151
                %p148 = scmp.ge.s32.totalorder %s147, 1
                %s152 = sphi %s141, %s141
                %s153 = sphi %s138, %s138
              $region31: #{preprocessing_forward.1} parent=27 // loop_header_branch
                %150 = sbr.rel (%p148) target = $region35
              $region32: #{preprocessing_forward.1} parent=27 // loop_body
                %v154 = vld [vmem:[%s152] sm:$0xff]
                %155 = vst [vmem:[%s153] sm:$0xff] %v154
                %v156 = vld [vmem:[%s152 + $0x8] sm:$0xff]
                %157 = vst [vmem:[%s153 + $0x8] sm:$0xff] %v156
                %v158 = vld [vmem:[%s152 + $0x20] sm:$0xff]
                %159 = vst [vmem:[%s153 + $0x10] sm:$0xff] %v158
                %v160 = vld [vmem:[%s152 + $0x28] sm:$0xff]
                %161 = vst [vmem:[%s153 + $0x18] sm:$0xff] %v160
                %v162 = vld [vmem:[%s152 + $0x40] sm:$0xff]
                %163 = vst [vmem:[%s153 + $0x20] sm:$0xff] %v162
                %v164 = vld [vmem:[%s152 + $0x48] sm:$0xff]
                %165 = vst [vmem:[%s153 + $0x28] sm:$0xff] %v164
                %v166 = vld [vmem:[%s152 + $0x60] sm:$0xff]
                %167 = vst [vmem:[%s153 + $0x30] sm:$0xff] %v166
                %v168 = vld [vmem:[%s152 + $0x68] sm:$0xff]
                %169 = vst [vmem:[%s153 + $0x38] sm:$0xff] %v168
              $region33: #{preprocessing_forward.1} parent=27 // loop_footer
                %s151 = sadd.s32 1, %s147
              $region34: #{preprocessing_forward.1} parent=27 // loop_footer_branch
                %146 = sbr.rel target = $region30
              $region35: #{preprocessing_forward.1} parent=27 // loop_exit
                _
            $region28: #{preprocessing_forward.1} parent=23 // pred_fallthru
              _
            // Predicated region
            $region36: #{preprocessing_forward.1} parent=23 // pred_check
              _
            $region37: #{preprocessing_forward.1} parent=23 // pred_check_branch
              %171 = sbr.rel target = $region39
            $region38: #{preprocessing_forward.1} parent=23 // pred_region
              _
            $region39: #{preprocessing_forward.1} parent=23 // pred_fallthru
              _
          $region24: #{preprocessing_forward.1} parent=19 // pred_fallthru
            _
          %172 = vnop
        $region20: #{preprocessing_forward.1} parent=15 // pred_fallthru
          _
        // Predicated region
        $region40: #{preprocessing_forward.1} parent=15 // pred_check
          %p173 = pneg %p55
        $region41: #{preprocessing_forward.1} parent=15 // pred_check_branch
          %175 = sbr.rel (%p173) target = $region43
        $region42: #{preprocessing_forward.1} parent=15 // pred_region
          %s176 = sand.u32 %s45, 1
          %s177 = sand.u32 %s45, 1
          %s178 = smul.addr %s177, 64
          %s179 = scalar_lea.vmem [#allocation3], %s178
          %s180 = smul.u32 4, %s9
          %s181 = smul.addr %s180, 4
          %s182 = scalar_lea.vmem %s1, %s181
          // Predicated region
          $region44: #{preprocessing_forward.1} parent=42 // pred_check
            _
          $region45: #{preprocessing_forward.1} parent=42 // pred_check_branch
            %184 = sbr.rel (0) target = $region47
          $region46: #{preprocessing_forward.1} parent=42 // pred_region
            // Predicated region
            $region48: #{preprocessing_forward.1} parent=46 // pred_check
              _
            $region49: #{preprocessing_forward.1} parent=46 // pred_check_branch
              %186 = sbr.rel (0) target = $region51
            $region50: #{preprocessing_forward.1} parent=46 // pred_region
              loop: start=0, step=1, limit=1
              $region52: #{preprocessing_forward.1} parent=50 // loop_pre_header
                _
              $region53: #{preprocessing_forward.1} parent=50 // loop_header
                %s188 = sphi 0, %s192
                %p189 = scmp.ge.s32.totalorder %s188, 1
                %s193 = sphi %s182, %s182
                %s194 = sphi %s179, %s179
              $region54: #{preprocessing_forward.1} parent=50 // loop_header_branch
                %191 = sbr.rel (%p189) target = $region58
              $region55: #{preprocessing_forward.1} parent=50 // loop_body
                %v195 = vld [vmem:[%s193] sm:$0xff]
                %196 = vst [vmem:[%s194] sm:$0xff] %v195
                %v197 = vld [vmem:[%s193 + $0x8] sm:$0xff]
                %198 = vst [vmem:[%s194 + $0x8] sm:$0xff] %v197
                %v199 = vld [vmem:[%s193 + $0x20] sm:$0xff]
                %200 = vst [vmem:[%s194 + $0x10] sm:$0xff] %v199
                %v201 = vld [vmem:[%s193 + $0x28] sm:$0xff]
                %202 = vst [vmem:[%s194 + $0x18] sm:$0xff] %v201
                %v203 = vld [vmem:[%s193 + $0x40] sm:$0xff]
                %204 = vst [vmem:[%s194 + $0x20] sm:$0xff] %v203
                %v205 = vld [vmem:[%s193 + $0x48] sm:$0xff]
                %206 = vst [vmem:[%s194 + $0x28] sm:$0xff] %v205
                %v207 = vld [vmem:[%s193 + $0x60] sm:$0xff]
                %208 = vst [vmem:[%s194 + $0x30] sm:$0xff] %v207
                %v209 = vld [vmem:[%s193 + $0x68] sm:$0xff]
                %210 = vst [vmem:[%s194 + $0x38] sm:$0xff] %v209
              $region56: #{preprocessing_forward.1} parent=50 // loop_footer
                %s192 = sadd.s32 1, %s188
              $region57: #{preprocessing_forward.1} parent=50 // loop_footer_branch
                %187 = sbr.rel target = $region53
              $region58: #{preprocessing_forward.1} parent=50 // loop_exit
                _
            $region51: #{preprocessing_forward.1} parent=46 // pred_fallthru
              _
            // Predicated region
            $region59: #{preprocessing_forward.1} parent=46 // pred_check
              _
            $region60: #{preprocessing_forward.1} parent=46 // pred_check_branch
              %212 = sbr.rel target = $region62
            $region61: #{preprocessing_forward.1} parent=46 // pred_region
              _
            $region62: #{preprocessing_forward.1} parent=46 // pred_fallthru
              _
          $region47: #{preprocessing_forward.1} parent=42 // pred_fallthru
            _
          %213 = vnop
        $region43: #{preprocessing_forward.1} parent=15 // pred_fallthru
          _
        // Predicated region
        $region63: #{preprocessing_forward.1} parent=15 // pred_check
          %p214 = pneg %p81
        $region64: #{preprocessing_forward.1} parent=15 // pred_check_branch
          %216 = sbr.rel (%p214) target = $region66
        $region65: #{preprocessing_forward.1} parent=15 // pred_region
          %s217 = smul.u32 4, %s9
          %p218 = scmp.lt.s32.totalorder %s217, 7
          %s219 = scalar_select %p218, %s217, 7
          %s220 = scalar_lea.vmem %s2, %s219
          %s221 = smul.u32 4, %s9
        $region66: #{preprocessing_forward.1} parent=15 // pred_fallthru
          _
      $region16: #{preprocessing_forward.1} parent=5 // pred_fallthru
        _
      %p222 = scmp.le.s32.totalorder 1, %s9
      %p223 = scmp.lt.s32.totalorder %s9, 3
      %p224 = pnand %p222, %p223
      %p225 = pneg %p224
      // Predicated region
      $region67: #{preprocessing_forward.1} parent=5 // pred_check
        _
      $region68: #{preprocessing_forward.1} parent=5 // pred_check_branch
        %227 = sbr.rel (%p224) target = $region70
      $region69: #{preprocessing_forward.1} parent=5 // pred_region
        %s228 = ssub.s32 %s9, 1
        %s229 = sand.u32 %s22, 1
        %s230 = sand.u32 %s22, 1
        %s231 = smul.addr %s230, 64
        %s232 = scalar_lea.vmem [#allocation2], %s231
        // Predicated region
        $region71: #{preprocessing_forward.1} parent=69 // pred_check
          %p233 = pneg %p35
        $region72: #{preprocessing_forward.1} parent=69 // pred_check_branch
          %235 = sbr.rel (%p233) target = $region74
        $region73: #{preprocessing_forward.1} parent=69 // pred_region
          _
        $region74: #{preprocessing_forward.1} parent=69 // pred_fallthru
          _
        %s236 = sand.u32 %s48, 1
        %s237 = sand.u32 %s48, 1
        %s238 = smul.addr %s237, 64
        %s239 = scalar_lea.vmem [#allocation3], %s238
        // Predicated region
        $region75: #{preprocessing_forward.1} parent=69 // pred_check
          %p240 = pneg %p61
        $region76: #{preprocessing_forward.1} parent=69 // pred_check_branch
          %242 = sbr.rel (%p240) target = $region78
        $region77: #{preprocessing_forward.1} parent=69 // pred_region
          _
        $region78: #{preprocessing_forward.1} parent=69 // pred_fallthru
          _
        %s243 = sand.u32 %s22, 1
        %s244 = sand.u32 %s22, 1
        %s245 = smul.addr %s244, 64
        %s246 = scalar_lea.vmem [#allocation2], %s245
        %p247 = pneg %p35
        %p248 = pneg %p32
        %s249 = sand.u32 %s48, 1
        %s250 = sand.u32 %s48, 1
        %s251 = smul.addr %s250, 64
        %s252 = scalar_lea.vmem [#allocation3], %s251
        %p253 = pneg %p61
        %p254 = pneg %p58
        %s255 = smul.u32 4, %s14
        %p256 = scmp.lt.s32.totalorder %s255, 7
        %s257 = scalar_select %p256, %s255, 7
        %s258 = scalar_lea.vmem %s2, %s257
        %p259 = pneg %p87
        %p260 = pneg %p84
        %p261 = pneg %p113
        %p262 = pneg %p110
        %s263 = smul.u32 4, %s14
        %p264 = scmp.lt.s32.totalorder %s263, 7
        %s265 = scalar_select %p264, %s263, 7
        %s266 = scalar_lea.vmem %s3, %s265
        %s267 = smul.u32 4, %s14
        %s268 = smul.u32 4, %s14
        %s269 = smul.u32 4, %s14
        %p270 = scmp.lt.s32.totalorder %s269, 7
        %s271 = scalar_select %p270, %s269, 7
        %s272 = scalar_lea.vmem %s2, %s271
        %s273 = smul.u32 4, %s14
        %s274 = smul.u32 4, %s14
        %p275 = scmp.lt.s32.totalorder %s274, 7
        %s276 = scalar_select %p275, %s274, 7
        %s277 = scalar_lea.vmem %s3, %s276
        %s278 = smul.u32 4, %s14
        %v279 = vld [vmem:[%s232] sm:$0xff]
        %v280 = vld [vmem:[%s232 + $0x8] sm:$0xff]
        %v281 = vld [vmem:[%s232 + $0x10] sm:$0xff]
        %v282 = vld [vmem:[%s232 + $0x18] sm:$0xff]
        %v283 = vld [vmem:[%s232 + $0x20] sm:$0xff]
        %v284 = vld [vmem:[%s232 + $0x28] sm:$0xff]
        %v285 = vld [vmem:[%s232 + $0x30] sm:$0xff]
        %v286 = vld [vmem:[%s232 + $0x38] sm:$0xff]
        %v287 = vunpack.c.l.bf16 %v279
        %v288 = vunpack.c.h.bf16 %v279
        %v289 = vunpack.c.l.bf16 %v280
        %v290 = vunpack.c.h.bf16 %v280
        %v291 = vunpack.c.l.bf16 %v281
        %v292 = vunpack.c.h.bf16 %v281
        %v293 = vunpack.c.l.bf16 %v282
        %v294 = vunpack.c.h.bf16 %v282
        %v295 = vunpack.c.l.bf16 %v283
        %v296 = vunpack.c.h.bf16 %v283
        %v297 = vunpack.c.l.bf16 %v284
        %v298 = vunpack.c.h.bf16 %v284
        %v299 = vunpack.c.l.bf16 %v285
        %v300 = vunpack.c.h.bf16 %v285
        %v301 = vunpack.c.l.bf16 %v286
        %v302 = vunpack.c.h.bf16 %v286
        %v303 = vld [vmem:[%s239] sm:$0xff]
        %v304 = vld [vmem:[%s239 + $0x8] sm:$0xff]
        %v305 = vld [vmem:[%s239 + $0x10] sm:$0xff]
        %v306 = vld [vmem:[%s239 + $0x18] sm:$0xff]
        %v307 = vld [vmem:[%s239 + $0x20] sm:$0xff]
        %v308 = vld [vmem:[%s239 + $0x28] sm:$0xff]
        %v309 = vld [vmem:[%s239 + $0x30] sm:$0xff]
        %v310 = vld [vmem:[%s239 + $0x38] sm:$0xff]
        %v311 = vunpack.c.l.bf16 %v303
        %v312 = vunpack.c.h.bf16 %v303
        %v313 = vunpack.c.l.bf16 %v304
        %v314 = vunpack.c.h.bf16 %v304
        %v315 = vunpack.c.l.bf16 %v305
        %v316 = vunpack.c.h.bf16 %v305
        %v317 = vunpack.c.l.bf16 %v306
        %v318 = vunpack.c.h.bf16 %v306
        %v319 = vunpack.c.l.bf16 %v307
        %v320 = vunpack.c.h.bf16 %v307
        %v321 = vunpack.c.l.bf16 %v308
        %v322 = vunpack.c.h.bf16 %v308
        %v323 = vunpack.c.l.bf16 %v309
        %v324 = vunpack.c.h.bf16 %v309
        %v325 = vunpack.c.l.bf16 %v310
        %v326 = vunpack.c.h.bf16 %v310
        %v327 = vld [vmem:[%s272] sm:$0xf]
        %v328 = vmul.f32 %v287, %v311
        %v329 = vmul.f32 %v288, %v312
        %v330 = vmul.f32 %v289, %v313
        %v331 = vmul.f32 %v290, %v314
        %v332 = vmul.f32 %v291, %v315
        %v333 = vmul.f32 %v292, %v316
        %v334 = vmul.f32 %v293, %v317
        %v335 = vmul.f32 %v294, %v318
        %v336 = vmul.f32 %v295, %v319
        %v337 = vmul.f32 %v296, %v320
        %v338 = vmul.f32 %v297, %v321
        %v339 = vmul.f32 %v298, %v322
        %v340 = vmul.f32 %v299, %v323
        %v341 = vmul.f32 %v300, %v324
        %v342 = vmul.f32 %v301, %v325
        %v343 = vmul.f32 %v302, %v326
        %v344 = vadd.f32 %v328, %v332
        %v345 = vadd.f32 %v344, %v336
        %v346 = vadd.f32 %v345, %v340
        %v347 = vrot.slane %v346, 4
        %v348 = vadd.f32 %v346, %v347
        %v349 = vrot.slane %v348, 2
        %v350 = vadd.f32 %v348, %v349
        %v351 = vrot.slane %v350, 1
        %v352 = vadd.f32 %v350, %v351
        %v353 = vadd.f32 %v329, %v333
        %v354 = vadd.f32 %v353, %v337
        %v355 = vadd.f32 %v354, %v341
        %v356 = vrot.slane %v355, 4
        %v357 = vadd.f32 %v355, %v356
        %v358 = vrot.slane %v357, 2
        %v359 = vadd.f32 %v357, %v358
        %v360 = vrot.slane %v359, 1
        %v361 = vadd.f32 %v359, %v360
        %v362 = vadd.f32 %v330, %v334
        %v363 = vadd.f32 %v362, %v338
        %v364 = vadd.f32 %v363, %v342
        %v365 = vrot.slane %v364, 4
        %v366 = vadd.f32 %v364, %v365
        %v367 = vrot.slane %v366, 2
        %v368 = vadd.f32 %v366, %v367
        %v369 = vrot.slane %v368, 1
        %v370 = vadd.f32 %v368, %v369
        %v371 = vadd.f32 %v331, %v335
        %v372 = vadd.f32 %v371, %v339
        %v373 = vadd.f32 %v372, %v343
        %v374 = vrot.slane %v373, 4
        %v375 = vadd.f32 %v373, %v374
        %v376 = vrot.slane %v375, 2
        %v377 = vadd.f32 %v375, %v376
        %v378 = vrot.slane %v377, 1
        %v379 = vadd.f32 %v377, %v378
        %v380 = vmul.f32 %v287, %v287
        %v381 = vmul.f32 %v288, %v288
        %v382 = vmul.f32 %v289, %v289
        %v383 = vmul.f32 %v290, %v290
        %v384 = vmul.f32 %v291, %v291
        %v385 = vmul.f32 %v292, %v292
        %v386 = vmul.f32 %v293, %v293
        %v387 = vmul.f32 %v294, %v294
        %v388 = vmul.f32 %v295, %v295
        %v389 = vmul.f32 %v296, %v296
        %v390 = vmul.f32 %v297, %v297
        %v391 = vmul.f32 %v298, %v298
        %v392 = vmul.f32 %v299, %v299
        %v393 = vmul.f32 %v300, %v300
        %v394 = vmul.f32 %v301, %v301
        %v395 = vmul.f32 %v302, %v302
        %v396 = vadd.f32 %v380, %v384
        %v397 = vadd.f32 %v396, %v388
        %v398 = vadd.f32 %v397, %v392
        %v399 = vrot.slane %v398, 4
        %v400 = vadd.f32 %v398, %v399
        %v401 = vrot.slane %v400, 2
        %v402 = vadd.f32 %v400, %v401
        %v403 = vrot.slane %v402, 1
        %v404 = vadd.f32 %v402, %v403
        %v405 = vadd.f32 %v381, %v385
        %v406 = vadd.f32 %v405, %v389
        %v407 = vadd.f32 %v406, %v393
        %v408 = vrot.slane %v407, 4
        %v409 = vadd.f32 %v407, %v408
        %v410 = vrot.slane %v409, 2
        %v411 = vadd.f32 %v409, %v410
        %v412 = vrot.slane %v411, 1
        %v413 = vadd.f32 %v411, %v412
        %v414 = vadd.f32 %v382, %v386
        %v415 = vadd.f32 %v414, %v390
        %v416 = vadd.f32 %v415, %v394
        %v417 = vrot.slane %v416, 4
        %v418 = vadd.f32 %v416, %v417
        %v419 = vrot.slane %v418, 2
        %v420 = vadd.f32 %v418, %v419
        %v421 = vrot.slane %v420, 1
        %v422 = vadd.f32 %v420, %v421
        %v423 = vadd.f32 %v383, %v387
        %v424 = vadd.f32 %v423, %v391
        %v425 = vadd.f32 %v424, %v395
        %v426 = vrot.slane %v425, 4
        %v427 = vadd.f32 %v425, %v426
        %v428 = vrot.slane %v427, 2
        %v429 = vadd.f32 %v427, %v428
        %v430 = vrot.slane %v429, 1
        %v431 = vadd.f32 %v429, %v430
        %v432 = vmul.f32 %v311, %v311
        %v433 = vmul.f32 %v312, %v312
        %v434 = vmul.f32 %v313, %v313
        %v435 = vmul.f32 %v314, %v314
        %v436 = vmul.f32 %v315, %v315
        %v437 = vmul.f32 %v316, %v316
        %v438 = vmul.f32 %v317, %v317
        %v439 = vmul.f32 %v318, %v318
        %v440 = vmul.f32 %v319, %v319
        %v441 = vmul.f32 %v320, %v320
        %v442 = vmul.f32 %v321, %v321
        %v443 = vmul.f32 %v322, %v322
        %v444 = vmul.f32 %v323, %v323
        %v445 = vmul.f32 %v324, %v324
        %v446 = vmul.f32 %v325, %v325
        %v447 = vmul.f32 %v326, %v326
        %v448 = vadd.f32 %v432, %v436
        %v449 = vadd.f32 %v448, %v440
        %v450 = vadd.f32 %v449, %v444
        %v451 = vrot.slane %v450, 4
        %v452 = vadd.f32 %v450, %v451
        %v453 = vrot.slane %v452, 2
        %v454 = vadd.f32 %v452, %v453
        %v455 = vrot.slane %v454, 1
        %v456 = vadd.f32 %v454, %v455
        %v457 = vadd.f32 %v433, %v437
        %v458 = vadd.f32 %v457, %v441
        %v459 = vadd.f32 %v458, %v445
        %v460 = vrot.slane %v459, 4
        %v461 = vadd.f32 %v459, %v460
        %v462 = vrot.slane %v461, 2
        %v463 = vadd.f32 %v461, %v462
        %v464 = vrot.slane %v463, 1
        %v465 = vadd.f32 %v463, %v464
        %v466 = vadd.f32 %v434, %v438
        %v467 = vadd.f32 %v466, %v442
        %v468 = vadd.f32 %v467, %v446
        %v469 = vrot.slane %v468, 4
        %v470 = vadd.f32 %v468, %v469
        %v471 = vrot.slane %v470, 2
        %v472 = vadd.f32 %v470, %v471
        %v473 = vrot.slane %v472, 1
        %v474 = vadd.f32 %v472, %v473
        %v475 = vadd.f32 %v435, %v439
        %v476 = vadd.f32 %v475, %v443
        %v477 = vadd.f32 %v476, %v447
        %v478 = vrot.slane %v477, 4
        %v479 = vadd.f32 %v477, %v478
        %v480 = vrot.slane %v479, 2
        %v481 = vadd.f32 %v479, %v480
        %v482 = vrot.slane %v481, 1
        %v483 = vadd.f32 %v481, %v482
        %v484 = vmax.f32 %v404, 1e-12
        %v485 = vmax.f32 %v413, 1e-12
        %v486 = vmax.f32 %v422, 1e-12
        %v487 = vmax.f32 %v431, 1e-12
        %v488 = vmax.f32 %v456, 1e-12
        %v489 = vmax.f32 %v465, 1e-12
        %v490 = vmax.f32 %v474, 1e-12
        %v491 = vmax.f32 %v483, 1e-12
        %v492 = vmul.f32 %v484, %v488
        %v493 = vmul.f32 %v485, %v489
        %v494 = vmul.f32 %v486, %v490
        %v495 = vmul.f32 %v487, %v491
        %v496 = vrsqrt.pop %v492
        %v497 = vmul.f32 %v496, %v492
        %v498 = vmul.f32 %v497, %v496
        %v499 = vmul.f32 0.5, %v498
        %v500 = vsub.f32 1.5, %v499
        %v501 = vmul.f32 %v496, %v500
        %vm502 = vweird.f32 %v492
        %vm503 = vweird.f32 %v496
        %vm504 = vmor %vm502, %vm503
        %v505 = vsel %vm504, %v496, %v501
        %v506 = vrsqrt.pop %v493
        %v507 = vmul.f32 %v506, %v493
        %v508 = vmul.f32 %v507, %v506
        %v509 = vmul.f32 0.5, %v508
        %v510 = vsub.f32 1.5, %v509
        %v511 = vmul.f32 %v506, %v510
        %vm512 = vweird.f32 %v493
        %vm513 = vweird.f32 %v506
        %vm514 = vmor %vm512, %vm513
        %v515 = vsel %vm514, %v506, %v511
        %v516 = vrsqrt.pop %v494
        %v517 = vmul.f32 %v516, %v494
        %v518 = vmul.f32 %v517, %v516
        %v519 = vmul.f32 0.5, %v518
        %v520 = vsub.f32 1.5, %v519
        %v521 = vmul.f32 %v516, %v520
        %vm522 = vweird.f32 %v494
        %vm523 = vweird.f32 %v516
        %vm524 = vmor %vm522, %vm523
        %v525 = vsel %vm524, %v516, %v521
        %v526 = vrsqrt.pop %v495
        %v527 = vmul.f32 %v526, %v495
        %v528 = vmul.f32 %v527, %v526
        %v529 = vmul.f32 0.5, %v528
        %v530 = vsub.f32 1.5, %v529
        %v531 = vmul.f32 %v526, %v530
        %vm532 = vweird.f32 %v495
        %vm533 = vweird.f32 %v526
        %vm534 = vmor %vm532, %vm533
        %v535 = vsel %vm534, %v526, %v531
        %v536 = vmul.f32 %v352, %v505
        %v537 = vmul.f32 %v361, %v515
        %v538 = vmul.f32 %v370, %v525
        %v539 = vmul.f32 %v379, %v535
        %v544 = vrot.slane %v537, 7
        %v545 = vrot.slane %v538, 6
        %v546 = vrot.slane %v539, 5
        %vm547 = vcmask 1040384
        %v548 = vsel %vm547, %v536, %v544
        %vm549 = vcmask 1042434
        %v550 = vsel %vm549, %v545, %v546
        %vm551 = vcmask 1041408
        %v552 = vsel %vm551, %v548, %v550
        %v554 = vmul.f32 %v327, %v552
        %v555 = vlaneseq
        %vm556 = vcmp.ge.s32.totalorder %v555, 0
        %vm557 = vcmp.lt.s32.totalorder %v555, 512
        %vm558 = vmand %vm556, %vm557
        %559 = vst.msk [vmem:[%s277] sm:$0xf] %vm558, %v554
        %s560 = smul.u32 4, %s14
        %p561 = scmp.lt.s32.totalorder %s560, 7
        %s562 = scalar_select %p561, %s560, 7
        %s563 = scalar_lea.vmem %s3, %s562
        // Predicated region
        $region79: #{preprocessing_forward.1} parent=69 // pred_check
          %p564 = pneg %p110
        $region80: #{preprocessing_forward.1} parent=69 // pred_check_branch
          %566 = sbr.rel (%p564) target = $region82
        $region81: #{preprocessing_forward.1} parent=69 // pred_region
          %s567 = smul.u32 4, %s14
        $region82: #{preprocessing_forward.1} parent=69 // pred_fallthru
          _
      $region70: #{preprocessing_forward.1} parent=5 // pred_fallthru
        _
      %p568 = scmp.le.s32.totalorder 2, %s9
      // Predicated region
      $region83: #{preprocessing_forward.1} parent=5 // pred_check
        %p569 = pneg %p568
      $region84: #{preprocessing_forward.1} parent=5 // pred_check_branch
        %571 = sbr.rel (%p569) target = $region86
      $region85: #{preprocessing_forward.1} parent=5 // pred_region
        %s572 = ssub.s32 %s9, 2
        // Predicated region
        $region87: #{preprocessing_forward.1} parent=85 // pred_check
          %p573 = pneg %p116
        $region88: #{preprocessing_forward.1} parent=85 // pred_check_branch
          %575 = sbr.rel (%p573) target = $region90
        $region89: #{preprocessing_forward.1} parent=85 // pred_region
          %s576 = smul.u32 4, %s15
          %p577 = scmp.lt.s32.totalorder %s576, 7
          %s578 = scalar_select %p577, %s576, 7
          %s579 = scalar_lea.vmem %s3, %s578
        $region90: #{preprocessing_forward.1} parent=85 // pred_fallthru
          _
      $region86: #{preprocessing_forward.1} parent=5 // pred_fallthru
        _
    $region6: #{preprocessing_forward.1} parent=1 // loop_footer
      %s13 = sadd.s32 1, %s9
    $region7: #{preprocessing_forward.1} parent=1 // loop_footer_branch
      %8 = sbr.rel target = $region3
    $region8: #{preprocessing_forward.1} parent=1 // loop_exit
      _

</llo_original>
